<compile_context>
chip_gen: v5e
topology: v5e:2x2
jax: 0.10.0
libtpu: 0.0.40
codegen_flags: <defaults>
</compile_context>

<pallas_src>
import jax
import jax.numpy as jnp
from jax.experimental import pallas as pl
from jax.experimental.pallas import tpu as pltpu

_SLOPE = 0.01


def _leaky_relu(x):
    # max(x, s*x) == LeakyReLU(s) for 0 < s < 1; cheaper than where(x>0, x, s*x).
    return jnp.maximum(x, _SLOPE * x)


def disc_kernel(x_ref, w1_ref, b1_ref, w2_ref, b2_ref, w3_ref, b3_ref, o_ref):
    """Fused 3-layer MLP + sigmoid, batch on the 128-lane axis.

    x_ref : (2, TB)    inputs  (features on sublanes, batch on lanes)
    w1    : (16, 2)    b1 : (16, 1)
    w2    : (16, 16)   b2 : (16, 1)
    w3    : (16, 1)    b3 : (1, 1)
    o_ref : (1, TB)    lane-dense output
    """
    x = x_ref[...]                                      # (2, TB)
    w1 = w1_ref[...]                                    # (16, 2)

    # --- Layer 1 (in=2): two broadcast multiply-adds on the VPU.
    # (Stride-0 sublane-broadcast loads would shave a few XLU shuffles on HW,
    # kept in portable broadcast form here.)
    h1 = w1[:, 0:1] * x[0:1, :] + w1[:, 1:2] * x[1:2, :] + b1_ref[...]  # (16, TB)
    h1 = _leaky_relu(h1)

    # --- Layer 2 (16x16): MXU matmul, N = TB is lane-dense.
    h2 = jnp.dot(w2_ref[...], h1, preferred_element_type=jnp.float32)
    h2 = _leaky_relu(h2 + b2_ref[...])                  # (16, TB)

    # --- Layer 3 (out=1): weighted sublane reduction (XLU slot), no MXU.
    h3 = jnp.sum(w3_ref[...] * h2, axis=0, keepdims=True) + b3_ref[...]  # (1, TB)

    # --- Sigmoid (exact): exp on the EUP, exact reciprocal on the tiny
    #     (1, TB) row -- effectively free, and bit-accurate vs the reference.
    o_ref[...] = 1.0 / (1.0 + jnp.exp(-h3))


def _round_up(n, m):
    return -(-n // m) * m


def discriminator_forward(x, params, *, batch_tile=8192):
    """x: [B, 2] float32 -> [B, 1] float32 (matches the torch Discriminator)."""
    w1, b1, w2, b2, w3, b3 = params
    B = x.shape[0]

    # Tile = batch elements per grid step, multiple of 128; capped for small B.
    tile = min(_round_up(batch_tile, 128), _round_up(B, 128))
    B_pad = _round_up(B, tile)
    n_tiles = B_pad // tile

    # Batch-on-lanes layout: features -> sublanes, batch -> 128-lane axis.
    # Single relayout pass; pad only when the batch is not a tile multiple.
    x_t = x.T.astype(jnp.float32)                       # (2, B)
    if B_pad != B:
        x_t = jnp.pad(x_t, ((0, 0), (0, B_pad - B)))    # zero-filled padding

    b1c = b1.reshape(16, 1)
    b2c = b2.reshape(16, 1)
    w3c = w3.reshape(1, 16).T                           # (16, 1)
    b3c = b3.reshape(1, 1)

    const = lambda shape: pl.BlockSpec(shape, lambda i: (0, 0))

    out_t = pl.pallas_call(
        disc_kernel,
        out_shape=jax.ShapeDtypeStruct((1, B_pad), jnp.float32),
        grid_spec=pltpu.PrefetchScalarGridSpec(
            num_scalar_prefetch=0,
            grid=(n_tiles,),
            in_specs=[
                pl.BlockSpec((2, tile), lambda i: (0, i)),   # x tile
                const(w1.shape), const(b1c.shape),
                const(w2.shape), const(b2c.shape),
                const(w3c.shape), const(b3c.shape),
            ],
            out_specs=pl.BlockSpec((1, tile), lambda i: (0, i)),
        ),
        # Batch axis is embarrassingly parallel.  On v7x, CORE_PARALLEL (or a
        # leading grid axis of size 2) would explicitly split it across both
        # TensorCores; kept portable here.
        compiler_params=pltpu.CompilerParams(
            dimension_semantics=("parallel",)),
    )(x_t, w1, b1c, w2, b2c, w3c, b3c)

    # Cheap epilogue: row slice + trailing unit axis (no batch-sized transpose).
    return out_t[0, :B][:, None]                        # (B, 1)


def init_params(key):
    """PyTorch-layout params: W is [out_features, in_features], U[-1/sqrt(fan_in), +]."""
    ks = jax.random.split(key, 6)

    def lin(kw, kb, fan_in, fan_out):
        bound = 1.0 / jnp.sqrt(jnp.float32(fan_in))
        w = jax.random.uniform(kw, (fan_out, fan_in), jnp.float32, -bound, bound)
        b = jax.random.uniform(kb, (fan_out,), jnp.float32, -bound, bound)
        return w, b

    w1, b1 = lin(ks[0], ks[1], 2, 16)
    w2, b2 = lin(ks[2], ks[3], 16, 16)
    w3, b3 = lin(ks[4], ks[5], 16, 1)
    return (w1, b1, w2, b2, w3, b3)


def reference_forward(x, params):
    w1, b1, w2, b2, w3, b3 = params
    h = _leaky_relu(x @ w1.T + b1)
    h = _leaky_relu(h @ w2.T + b2)
    return jax.nn.sigmoid(h @ w3.T + b3)


if __name__ == "__main__":
    key = jax.random.PRNGKey(0)
    k_x, k_p = jax.random.split(key)

    # Small batch, not a multiple of 128 -> exercises lane padding + tile cap.
    B = 300
    x = jax.random.normal(k_x, (B, 2), jnp.float32)
    params = init_params(k_p)

    out = discriminator_forward(x, params)
    out = jax.block_until_ready(out)

    ref = reference_forward(x, params)
    assert out.shape == (B, 1)
    # Exact sigmoid now -> tight tolerance.
    assert jnp.allclose(out, ref, atol=1e-5, rtol=1e-5), "mismatch vs JAX reference"

    print("KERNEL_OK")
</pallas_src>

<mosaic_0001>
module attributes {stable_mosaic.version = 11 : i64} {
  func.func @disc_kernel(%arg0: i32, %arg1: memref<2x384xf32, #tpu.memory_space<vmem>>, %arg2: memref<16x2xf32, #tpu.memory_space<vmem>>, %arg3: memref<16x1xf32, #tpu.memory_space<vmem>>, %arg4: memref<16x16xf32, #tpu.memory_space<vmem>>, %arg5: memref<16x1xf32, #tpu.memory_space<vmem>>, %arg6: memref<16x1xf32, #tpu.memory_space<vmem>>, %arg7: memref<1x1xf32, #tpu.memory_space<vmem>>, %arg8: memref<1x384xf32, #tpu.memory_space<vmem>>) attributes {dimension_semantics = [#tpu.dimension_semantics<parallel>], iteration_bounds = array<i64: 1>, scalar_prefetch = 0 : i64, scratch_operands = 0 : i64, tpu.core_type = #tpu.core_type<tc>, window_params = [{transform_indices = @transform_0, window_bounds = array<i64: 2, 384>}, {pipeline_mode = #tpu.pipeline_mode<synchronous>, transform_indices = @transform_1, window_bounds = array<i64: 16, 2>}, {pipeline_mode = #tpu.pipeline_mode<synchronous>, transform_indices = @transform_2, window_bounds = array<i64: 16, 1>}, {pipeline_mode = #tpu.pipeline_mode<synchronous>, transform_indices = @transform_3, window_bounds = array<i64: 16, 16>}, {pipeline_mode = #tpu.pipeline_mode<synchronous>, transform_indices = @transform_4, window_bounds = array<i64: 16, 1>}, {pipeline_mode = #tpu.pipeline_mode<synchronous>, transform_indices = @transform_5, window_bounds = array<i64: 16, 1>}, {pipeline_mode = #tpu.pipeline_mode<synchronous>, transform_indices = @transform_6, window_bounds = array<i64: 1, 1>}, {transform_indices = @transform_7, window_bounds = array<i64: 1, 384>}]} {
    %c0 = arith.constant 0 : index
    %c0_0 = arith.constant 0 : index
    %0 = vector.load %arg1[%c0, %c0_0] : memref<2x384xf32, #tpu.memory_space<vmem>>, vector<2x384xf32>
    %c0_1 = arith.constant 0 : index
    %c0_2 = arith.constant 0 : index
    %1 = vector.load %arg2[%c0_1, %c0_2] : memref<16x2xf32, #tpu.memory_space<vmem>>, vector<16x2xf32>
    %2 = vector.extract_strided_slice %1 {offsets = [0, 0], sizes = [16, 1], strides = [1, 1]} : vector<16x2xf32> to vector<16x1xf32>
    %3 = vector.extract_strided_slice %0 {offsets = [0, 0], sizes = [1, 384], strides = [1, 1]} : vector<2x384xf32> to vector<1x384xf32>
    %4 = vector.broadcast %2 : vector<16x1xf32> to vector<16x384xf32>
    %5 = vector.broadcast %3 : vector<1x384xf32> to vector<16x384xf32>
    %6 = arith.mulf %4, %5 : vector<16x384xf32>
    %7 = vector.extract_strided_slice %1 {offsets = [0, 1], sizes = [16, 1], strides = [1, 1]} : vector<16x2xf32> to vector<16x1xf32>
    %8 = vector.extract_strided_slice %0 {offsets = [1, 0], sizes = [1, 384], strides = [1, 1]} : vector<2x384xf32> to vector<1x384xf32>
    %9 = vector.broadcast %7 : vector<16x1xf32> to vector<16x384xf32>
    %10 = vector.broadcast %8 : vector<1x384xf32> to vector<16x384xf32>
    %11 = arith.mulf %9, %10 : vector<16x384xf32>
    %12 = arith.addf %6, %11 : vector<16x384xf32>
    %c0_3 = arith.constant 0 : index
    %c0_4 = arith.constant 0 : index
    %13 = vector.load %arg3[%c0_3, %c0_4] : memref<16x1xf32, #tpu.memory_space<vmem>>, vector<16x1xf32>
    %14 = vector.broadcast %13 : vector<16x1xf32> to vector<16x384xf32>
    %15 = arith.addf %12, %14 : vector<16x384xf32>
    %cst = arith.constant 0.00999999977 : f32
    %16 = vector.broadcast %cst : f32 to vector<16x384xf32>
    %17 = arith.mulf %16, %15 : vector<16x384xf32>
    %18 = arith.maximumf %15, %17 : vector<16x384xf32>
    %c0_5 = arith.constant 0 : index
    %c0_6 = arith.constant 0 : index
    %19 = vector.load %arg4[%c0_5, %c0_6] : memref<16x16xf32, #tpu.memory_space<vmem>>, vector<16x16xf32>
    %cst_7 = arith.constant dense<0.000000e+00> : vector<16x384xf32>
    %20 = tpu.matmul %19, %18, %cst_7 {dimension_numbers = #tpu.dot_dimension_numbers<[1], [0], [0], [1], [0, 0, 1, 1], [], []>} : vector<16x16xf32>, vector<16x384xf32>, vector<16x384xf32> -> vector<16x384xf32>
    %c0_8 = arith.constant 0 : index
    %c0_9 = arith.constant 0 : index
    %21 = vector.load %arg5[%c0_8, %c0_9] : memref<16x1xf32, #tpu.memory_space<vmem>>, vector<16x1xf32>
    %22 = vector.broadcast %21 : vector<16x1xf32> to vector<16x384xf32>
    %23 = arith.addf %20, %22 : vector<16x384xf32>
    %cst_10 = arith.constant 0.00999999977 : f32
    %24 = vector.broadcast %cst_10 : f32 to vector<16x384xf32>
    %25 = arith.mulf %24, %23 : vector<16x384xf32>
    %26 = arith.maximumf %23, %25 : vector<16x384xf32>
    %c0_11 = arith.constant 0 : index
    %c0_12 = arith.constant 0 : index
    %27 = vector.load %arg6[%c0_11, %c0_12] : memref<16x1xf32, #tpu.memory_space<vmem>>, vector<16x1xf32>
    %28 = vector.broadcast %27 : vector<16x1xf32> to vector<16x384xf32>
    %29 = arith.mulf %28, %26 : vector<16x384xf32>
    %cst_13 = arith.constant dense<0.000000e+00> : vector<384xf32>
    %30 = vector.multi_reduction <add>, %29, %cst_13 [0] : vector<16x384xf32> to vector<384xf32>
    %31 = vector.shape_cast %30 : vector<384xf32> to vector<1x384xf32>
    %c0_14 = arith.constant 0 : index
    %c0_15 = arith.constant 0 : index
    %32 = vector.load %arg7[%c0_14, %c0_15] : memref<1x1xf32, #tpu.memory_space<vmem>>, vector<1x1xf32>
    %33 = vector.broadcast %32 : vector<1x1xf32> to vector<1x384xf32>
    %34 = arith.addf %31, %33 : vector<1x384xf32>
    %cst_16 = arith.constant 0.000000e+00 : f32
    %35 = vector.broadcast %cst_16 : f32 to vector<1x384xf32>
    %36 = arith.subf %35, %34 : vector<1x384xf32>
    %37 = math.exp %36 : vector<1x384xf32>
    %cst_17 = arith.constant 1.000000e+00 : f32
    %38 = vector.broadcast %cst_17 : f32 to vector<1x384xf32>
    %39 = arith.addf %38, %37 : vector<1x384xf32>
    %cst_18 = arith.constant 1.000000e+00 : f32
    %40 = vector.broadcast %cst_18 : f32 to vector<1x384xf32>
    %41 = arith.divf %40, %39 : vector<1x384xf32>
    %c0_19 = arith.constant 0 : index
    %c0_20 = arith.constant 0 : index
    %42 = vector.load %arg8[%c0_19, %c0_20] : memref<1x384xf32, #tpu.memory_space<vmem>>, vector<1x384xf32>
    tpu.vector_store %arg8[%c0_19, %c0_20], %41 {strides = array<i32>} : memref<1x384xf32, #tpu.memory_space<vmem>>, vector<1x384xf32>,
    return
  }
  func.func @transform_0(%arg0: i32) -> (i32, i32) {
    %c0_i32 = arith.constant 0 : i32
    %c0_i32_0 = arith.constant 0 : i32
    return %c0_i32, %arg0 : i32, i32
  }
  func.func @transform_1(%arg0: i32) -> (i32, i32) {
    %c0_i32 = arith.constant 0 : i32
    %c0_i32_0 = arith.constant 0 : i32
    %c0_i32_1 = arith.constant 0 : i32
    return %c0_i32, %c0_i32_0 : i32, i32
  }
  func.func @transform_2(%arg0: i32) -> (i32, i32) {
    %c0_i32 = arith.constant 0 : i32
    %c0_i32_0 = arith.constant 0 : i32
    %c0_i32_1 = arith.constant 0 : i32
    return %c0_i32, %c0_i32_0 : i32, i32
  }
  func.func @transform_3(%arg0: i32) -> (i32, i32) {
    %c0_i32 = arith.constant 0 : i32
    %c0_i32_0 = arith.constant 0 : i32
    %c0_i32_1 = arith.constant 0 : i32
    return %c0_i32, %c0_i32_0 : i32, i32
  }
  func.func @transform_4(%arg0: i32) -> (i32, i32) {
    %c0_i32 = arith.constant 0 : i32
    %c0_i32_0 = arith.constant 0 : i32
    %c0_i32_1 = arith.constant 0 : i32
    return %c0_i32, %c0_i32_0 : i32, i32
  }
  func.func @transform_5(%arg0: i32) -> (i32, i32) {
    %c0_i32 = arith.constant 0 : i32
    %c0_i32_0 = arith.constant 0 : i32
    %c0_i32_1 = arith.constant 0 : i32
    return %c0_i32, %c0_i32_0 : i32, i32
  }
  func.func @transform_6(%arg0: i32) -> (i32, i32) {
    %c0_i32 = arith.constant 0 : i32
    %c0_i32_0 = arith.constant 0 : i32
    %c0_i32_1 = arith.constant 0 : i32
    return %c0_i32, %c0_i32_0 : i32, i32
  }
  func.func @transform_7(%arg0: i32) -> (i32, i32) {
    %c0_i32 = arith.constant 0 : i32
    %c0_i32_0 = arith.constant 0 : i32
    return %c0_i32, %arg0 : i32, i32
  }
}

</mosaic_0001>

<llo_original>
// kernel: tpu_custom_call.1
$region0: #{tpu_custom_call.1}
  #allocation0 [shape = 'u32[]', space=smem, size = 0x4, offset = 0x4, fixed_abs, tag = 'smem constant byte address 0x4 - core index']
  #allocation1 [shape = 'u32[72,128]{1,0:T(1,128)}', space=vmem, size = 0x9000, scoped, tag = 'internal scratch']
  #allocation2 [shape = 'f32[1,1]{1,0:T(1,128)S(1)}', space=vmem, size = 0x200, scoped, tag = 'scoped memory for tpu_custom_call.1']
  %s0 = inlined_call_operand.vmem [shape: f32[2,384], index: 0, kind: input, shape index: {}]
  %s1 = inlined_call_operand.vmem [shape: f32[16,2], index: 1, kind: input, shape index: {}]
  %s2 = inlined_call_operand.vmem [shape: f32[16,1], index: 2, kind: input, shape index: {}]
  %s3 = inlined_call_operand.vmem [shape: f32[16,16], index: 3, kind: input, shape index: {}]
  %s4 = inlined_call_operand.vmem [shape: f32[16,1], index: 4, kind: input, shape index: {}]
  %s5 = inlined_call_operand.vmem [shape: f32[16,1], index: 5, kind: input, shape index: {}]
  %s6 = inlined_call_operand.<no memory space> [shape: f32[1,1], index: 6, kind: input, shape index: {}]
  %s7 = inlined_call_operand.hbm [shape: f32[1,384], index: 7, kind: output, shape index: {}]
  %s8 = sld [smem:[#allocation0]]
  $region38: #{tpu_custom_call.1} parent=0
    _
  %s10 = ssub.s32 1, %s8
  %s11 = scalar_select 0, %s10, %s8
  %v12 = vstv %s6
  %13 = vst [vmem:[#allocation2] sm:$0x1] %v12
  $region1: #{tpu_custom_call.1} parent=0
    #allocation3 [shape = 'u8[1536]{0}', space=vmem, size = 0x800, scoped, tag = 'output window, operand 0, single buffered']
    #allocation4 [shape = 's32[1]{0}', space=sflag, size = 0x4, scoped, tag = 'scoped memory for tpu_custom_call.1']
    %14 = vsyncpa [#allocation4], 0
    // Predicated region
    $region2: #{tpu_custom_call.1} parent=1 // pred_check
      _
    $region3: #{tpu_custom_call.1} parent=1 // pred_check_branch
      %16 = sbr.rel (0) target = $region5
    $region4: #{tpu_custom_call.1} parent=1 // pred_region
      _
    $region5: #{tpu_custom_call.1} parent=1 // pred_fallthru
      _
    // Predicated region
    $region6: #{tpu_custom_call.1} parent=1 // pred_check
      _
    $region7: #{tpu_custom_call.1} parent=1 // pred_check_branch
      %18 = sbr.rel (0) target = $region9
    $region8: #{tpu_custom_call.1} parent=1 // pred_region
      _
    $region9: #{tpu_custom_call.1} parent=1 // pred_fallthru
      _
    // Predicated region
    $region10: #{tpu_custom_call.1} parent=1 // pred_check
      _
    $region11: #{tpu_custom_call.1} parent=1 // pred_check_branch
      %20 = sbr.rel (0) target = $region13
    $region12: #{tpu_custom_call.1} parent=1 // pred_region
      _
    $region13: #{tpu_custom_call.1} parent=1 // pred_fallthru
      _
    // Predicated region
    $region14: #{tpu_custom_call.1} parent=1 // pred_check
      _
    $region15: #{tpu_custom_call.1} parent=1 // pred_check_branch
      %22 = sbr.rel (0) target = $region17
    $region16: #{tpu_custom_call.1} parent=1 // pred_region
      _
    $region17: #{tpu_custom_call.1} parent=1 // pred_fallthru
      _
    // Predicated region
    $region18: #{tpu_custom_call.1} parent=1 // pred_check
      _
    $region19: #{tpu_custom_call.1} parent=1 // pred_check_branch
      %24 = sbr.rel (0) target = $region21
    $region20: #{tpu_custom_call.1} parent=1 // pred_region
      _
    $region21: #{tpu_custom_call.1} parent=1 // pred_fallthru
      _
    // Predicated region
    $region22: #{tpu_custom_call.1} parent=1 // pred_check
      _
    $region23: #{tpu_custom_call.1} parent=1 // pred_check_branch
      %26 = sbr.rel (0) target = $region25
    $region24: #{tpu_custom_call.1} parent=1 // pred_region
      _
    $region25: #{tpu_custom_call.1} parent=1 // pred_fallthru
      _
    // Predicated region
    $region26: #{tpu_custom_call.1} parent=1 // pred_check
      _
    $region27: #{tpu_custom_call.1} parent=1 // pred_check_branch
      %28 = sbr.rel (0) target = $region29
    $region28: #{tpu_custom_call.1} parent=1 // pred_region
      _
    $region29: #{tpu_custom_call.1} parent=1 // pred_fallthru
      _
    %v29 = vld [vmem:[%s0] sm:$0x3f]
    %v30 = vld [vmem:[%s1] sm:$0xff]
    %v31 = vld [vmem:[%s1 + $0x8] sm:$0xff]
    %33 = vset.pattern.permute.xlu0 0
    %34 = vperm.xlu0 %33, %v30
    %v35 = vpop.permute.xlu0 %34
    %38 = vset.pattern.permute.xlu0 0
    %39 = vperm.xlu0 %38, %v31
    %v40 = vpop.permute.xlu0 %39
    %v43 = vperm.slane %v29, 0
    %v44 = vperm.slane %v29, 2
    %v45 = vperm.slane %v29, 4
    %v49 = vperm.slane %v43, 0
    %v50 = vperm.slane %v44, 0
    %v51 = vperm.slane %v45, 0
    %v52 = vmul.f32 %v35, %v49
    %v53 = vmul.f32 %v35, %v50
    %v54 = vmul.f32 %v35, %v51
    %v55 = vmul.f32 %v40, %v49
    %v56 = vmul.f32 %v40, %v50
    %v57 = vmul.f32 %v40, %v51
    %58 = vset.pattern.permute.xlu0 1
    %59 = vperm.xlu0 %58, %v30
    %v60 = vpop.permute.xlu0 %59
    %62 = vset.pattern.permute.xlu0 1
    %63 = vperm.xlu0 %62, %v31
    %v64 = vpop.permute.xlu0 %63
    %v66 = vperm.slane %v29, 1
    %v67 = vperm.slane %v29, 3
    %v68 = vperm.slane %v29, 5
    %v72 = vperm.slane %v66, 1
    %v73 = vperm.slane %v67, 1
    %v74 = vperm.slane %v68, 1
    %v75 = vmul.f32 %v60, %v72
    %v76 = vmul.f32 %v60, %v73
    %v77 = vmul.f32 %v60, %v74
    %v78 = vmul.f32 %v64, %v72
    %v79 = vmul.f32 %v64, %v73
    %v80 = vmul.f32 %v64, %v74
    %v81 = vadd.f32 %v52, %v75
    %v82 = vadd.f32 %v53, %v76
    %v83 = vadd.f32 %v54, %v77
    %v84 = vadd.f32 %v55, %v78
    %v85 = vadd.f32 %v56, %v79
    %v86 = vadd.f32 %v57, %v80
    %v87 = vld [vmem:[%s2] sm:$0xff]
    %v88 = vld [vmem:[%s2 + $0x8] sm:$0xff]
    %90 = vset.pattern.permute.xlu0 0
    %91 = vperm.xlu0 %90, %v87
    %v92 = vpop.permute.xlu0 %91
    %95 = vset.pattern.permute.xlu0 0
    %96 = vperm.xlu0 %95, %v88
    %v97 = vpop.permute.xlu0 %96
    %v99 = vadd.f32 %v81, %v92
    %v100 = vadd.f32 %v82, %v92
    %v101 = vadd.f32 %v83, %v92
    %v102 = vadd.f32 %v84, %v97
    %v103 = vadd.f32 %v85, %v97
    %v104 = vadd.f32 %v86, %v97
    %v105 = vmul.f32 %v99, 0.01
    %v106 = vmul.f32 %v100, 0.01
    %v107 = vmul.f32 %v101, 0.01
    %v108 = vmul.f32 %v102, 0.01
    %v109 = vmul.f32 %v103, 0.01
    %v110 = vmul.f32 %v104, 0.01
    %v111 = vmax.f32 %v99, %v105
    %v112 = vmax.f32 %v100, %v106
    %v113 = vmax.f32 %v101, %v107
    %v114 = vmax.f32 %v102, %v108
    %v115 = vmax.f32 %v103, %v109
    %v116 = vmax.f32 %v104, %v110
    %v117 = vld [vmem:[%s3] sm:$0xff]
    %v118 = vld [vmem:[%s3 + $0x8] sm:$0xff]
    %v119 = vld [vmem:[%s4] sm:$0xff]
    %v120 = vld [vmem:[%s4 + $0x8] sm:$0xff]
    %122 = vset.pattern.permute.xlu0 0
    %123 = vperm.xlu0 %122, %v119
    %v124 = vpop.permute.xlu0 %123
    %127 = vset.pattern.permute.xlu0 0
    %128 = vperm.xlu0 %127, %v120
    %v129 = vpop.permute.xlu0 %128
    %vm131 = vcmask 130048
    %v133 = vsel %vm131, %v117, 0
    %v136 = vsel %vm131, %v118, 0
    %138 = vmatpush.msra.mxu0 0.0
    %139 = vmatpush.msra.mxu0 0.0
    %140 = vmatpush.msra.mxu0 0.0
    %141 = vmatpush.msra.mxu0 0.0
    %142 = vmatpush.msra.mxu0 0.0
    %143 = vmatpush.msra.mxu0 0.0
    %144 = vmatpush.msra.mxu0 0.0
    %145 = vmatpush.msra.mxu0 0.0
    %146 = vmatpush.msra.mxu0 0.0
    %147 = vmatpush.msra.mxu0 0.0
    %148 = vmatpush.msra.mxu0 0.0
    %149 = vmatpush.msra.mxu0 0.0
    %150 = vmatpush.msra.mxu0 0.0
    %151 = vmatpush.msra.mxu0 0.0
    %152 = vmatpush.msra.mxu0 %v114
    %153 = vmatpush.msra.mxu0 %v111
    %154 = vmatmul.f32.gmra.mxu0 %v133
    %v155 = vpop.f32.mrf.mxu0
    %v156 = vadd.f32 %v124, %v155
    %157 = vmatmul.f32.gmra.mxu0 %v136
    %v158 = vpop.f32.mrf.mxu0
    %v159 = vadd.f32 %v129, %v158
    %160 = vdwg.mxu0
    %161 = vmatpush.msra.mxu0 0.0
    %162 = vmatpush.msra.mxu0 0.0
    %163 = vmatpush.msra.mxu0 0.0
    %164 = vmatpush.msra.mxu0 0.0
    %165 = vmatpush.msra.mxu0 0.0
    %166 = vmatpush.msra.mxu0 0.0
    %167 = vmatpush.msra.mxu0 0.0
    %168 = vmatpush.msra.mxu0 0.0
    %169 = vmatpush.msra.mxu0 0.0
    %170 = vmatpush.msra.mxu0 0.0
    %171 = vmatpush.msra.mxu0 0.0
    %172 = vmatpush.msra.mxu0 0.0
    %173 = vmatpush.msra.mxu0 0.0
    %174 = vmatpush.msra.mxu0 0.0
    %175 = vmatpush.msra.mxu0 %v115
    %176 = vmatpush.msra.mxu0 %v112
    %177 = vmatmul.f32.gmra.mxu0 %v133
    %v178 = vpop.f32.mrf.mxu0
    %v179 = vadd.f32 %v124, %v178
    %180 = vmatmul.f32.gmra.mxu0 %v136
    %v181 = vpop.f32.mrf.mxu0
    %v182 = vadd.f32 %v129, %v181
    %183 = vdwg.mxu0
    %184 = vmatpush.msra.mxu0 0.0
    %185 = vmatpush.msra.mxu0 0.0
    %186 = vmatpush.msra.mxu0 0.0
    %187 = vmatpush.msra.mxu0 0.0
    %188 = vmatpush.msra.mxu0 0.0
    %189 = vmatpush.msra.mxu0 0.0
    %190 = vmatpush.msra.mxu0 0.0
    %191 = vmatpush.msra.mxu0 0.0
    %192 = vmatpush.msra.mxu0 0.0
    %193 = vmatpush.msra.mxu0 0.0
    %194 = vmatpush.msra.mxu0 0.0
    %195 = vmatpush.msra.mxu0 0.0
    %196 = vmatpush.msra.mxu0 0.0
    %197 = vmatpush.msra.mxu0 0.0
    %198 = vmatpush.msra.mxu0 %v116
    %199 = vmatpush.msra.mxu0 %v113
    %200 = vmatmul.f32.gmra.mxu0 %v133
    %v201 = vpop.f32.mrf.mxu0
    %v202 = vadd.f32 %v124, %v201
    %203 = vmatmul.f32.gmra.mxu0 %v136
    %v204 = vpop.f32.mrf.mxu0
    %v205 = vadd.f32 %v129, %v204
    %206 = vdwg.mxu0
    %v207 = vmul.f32 %v156, 0.01
    %v208 = vmul.f32 %v179, 0.01
    %v209 = vmul.f32 %v202, 0.01
    %v210 = vmul.f32 %v159, 0.01
    %v211 = vmul.f32 %v182, 0.01
    %v212 = vmul.f32 %v205, 0.01
    %v213 = vmax.f32 %v156, %v207
    %v214 = vmax.f32 %v179, %v208
    %v215 = vmax.f32 %v202, %v209
    %v216 = vmax.f32 %v159, %v210
    %v217 = vmax.f32 %v182, %v211
    %v218 = vmax.f32 %v205, %v212
    %v219 = vld [vmem:[%s5] sm:$0xff]
    %v220 = vld [vmem:[%s5 + $0x8] sm:$0xff]
    %222 = vset.pattern.permute.xlu0 0
    %223 = vperm.xlu0 %222, %v219
    %v224 = vpop.permute.xlu0 %223
    %227 = vset.pattern.permute.xlu0 0
    %228 = vperm.xlu0 %227, %v220
    %v229 = vpop.permute.xlu0 %228
    %v231 = vmul.f32 %v224, %v213
    %v232 = vmul.f32 %v224, %v214
    %v233 = vmul.f32 %v224, %v215
    %v234 = vmul.f32 %v229, %v216
    %v235 = vmul.f32 %v229, %v217
    %v236 = vmul.f32 %v229, %v218
    %v237 = vadd.f32 %v231, %v234
    %v238 = vrot.slane %v237, 4
    %v239 = vadd.f32 %v237, %v238
    %v240 = vrot.slane %v239, 2
    %v241 = vadd.f32 %v239, %v240
    %v242 = vrot.slane %v241, 1
    %v243 = vadd.f32 %v241, %v242
    %v244 = vadd.f32 %v232, %v235
    %v245 = vrot.slane %v244, 4
    %v246 = vadd.f32 %v244, %v245
    %v247 = vrot.slane %v246, 2
    %v248 = vadd.f32 %v246, %v247
    %v249 = vrot.slane %v248, 1
    %v250 = vadd.f32 %v248, %v249
    %v251 = vadd.f32 %v233, %v236
    %v252 = vrot.slane %v251, 4
    %v253 = vadd.f32 %v251, %v252
    %v254 = vrot.slane %v253, 2
    %v255 = vadd.f32 %v253, %v254
    %v256 = vrot.slane %v255, 1
    %v257 = vadd.f32 %v255, %v256
    %v258 = vld [vmem:[#allocation2] sm:$0x1]
    %260 = vset.pattern.permute.xlu0 0
    %261 = vperm.xlu0 %260, %v258
    %v262 = vpop.permute.xlu0 %261
    %v264 = vperm.slane %v262, 0
    %v265 = vadd.f32 %v243, %v264
    %v266 = vadd.f32 %v250, %v264
    %v267 = vadd.f32 %v257, %v264
    %v268 = vsub.f32 0.0, %v265
    %v269 = vsub.f32 0.0, %v266
    %v270 = vsub.f32 0.0, %v267
    %v271 = vmul.f32 %v268, 1.442695
    %v272 = vpow.pop %v271
    %v273 = vmul.f32 %v269, 1.442695
    %v274 = vpow.pop %v273
    %v275 = vmul.f32 %v270, 1.442695
    %v276 = vpow.pop %v275
    %v277 = vadd.f32 %v272, 1.0
    %v278 = vadd.f32 %v274, 1.0
    %v279 = vadd.f32 %v276, 1.0
    %v280 = vrcp.pop %v277
    %v281 = vmul.f32 %v277, %v280
    %v282 = vsub.f32 1.0, %v281
    %v283 = vmul.f32 %v280, %v282
    %v284 = vadd.f32 %v280, %v283
    %vm285 = vweird.f32 %v277
    %vm286 = vweird.f32 %v280
    %vm287 = vmor %vm285, %vm286
    %v288 = vsel %vm287, %v280, %v284
    %v289 = vand.u32 2147483647, %v277
    %vm290 = vcmp.eq.f32.partialorder %v289, 8.507059e+37
    %v291 = vand.u32 %v277, 2147483648
    %v292 = vor.u32 1.1754944e-38, %v291
    %v293 = vsel %vm290, %v292, %v288
    %v294 = vmul.f32 1.0, %v293
    %v295 = vrcp.pop %v278
    %v296 = vmul.f32 %v278, %v295
    %v297 = vsub.f32 1.0, %v296
    %v298 = vmul.f32 %v295, %v297
    %v299 = vadd.f32 %v295, %v298
    %vm300 = vweird.f32 %v278
    %vm301 = vweird.f32 %v295
    %vm302 = vmor %vm300, %vm301
    %v303 = vsel %vm302, %v295, %v299
    %v304 = vand.u32 2147483647, %v278
    %vm305 = vcmp.eq.f32.partialorder %v304, 8.507059e+37
    %v306 = vand.u32 %v278, 2147483648
    %v307 = vor.u32 1.1754944e-38, %v306
    %v308 = vsel %vm305, %v307, %v303
    %v309 = vmul.f32 1.0, %v308
    %v310 = vrcp.pop %v279
    %v311 = vmul.f32 %v279, %v310
    %v312 = vsub.f32 1.0, %v311
    %v313 = vmul.f32 %v310, %v312
    %v314 = vadd.f32 %v310, %v313
    %vm315 = vweird.f32 %v279
    %vm316 = vweird.f32 %v310
    %vm317 = vmor %vm315, %vm316
    %v318 = vsel %vm317, %v310, %v314
    %v319 = vand.u32 2147483647, %v279
    %vm320 = vcmp.eq.f32.partialorder %v319, 8.507059e+37
    %v321 = vand.u32 %v279, 2147483648
    %v322 = vor.u32 1.1754944e-38, %v321
    %v323 = vsel %vm320, %v322, %v318
    %v324 = vmul.f32 1.0, %v323
    %v328 = vrot.slane %v309, 7
    %v329 = vrot.slane %v324, 6
    %vm330 = vcmask 1040384
    %v331 = vsel %vm330, %v294, %v328
    %vm332 = vcmask 1041408
    %v333 = vsel %vm332, %v331, %v329
    %v335 = vlaneseq
    %vm336 = vcmp.ge.s32.totalorder %v335, 0
    %vm337 = vcmp.lt.s32.totalorder %v335, 384
    %vm338 = vmand %vm336, %vm337
    %339 = vst.msk [vmem:[#allocation3] sm:$0x7] %vm338, %v333
    // Predicated region
    $region30: #{tpu_custom_call.1} parent=1 // pred_check
      _
    $region31: #{tpu_custom_call.1} parent=1 // pred_check_branch
      %341 = sbr.rel (0) target = $region33
    $region32: #{tpu_custom_call.1} parent=1 // pred_region
      %343 = vsyncadd [#allocation4], 0
      %s345 = sshll.u32 [#allocation3], 4
      %s346 = int_to_ptr.vmem [resolvable:$true] %s345
      %s347 = sshll.u32 %s7, 4
      %s348 = int_to_ptr.hbm [resolvable:$true] %s347
      %350 = dma.vmem_to_hbm [thread:$0]  %s346, 48, %s348, [#allocation4]
    $region33: #{tpu_custom_call.1} parent=1 // pred_fallthru
      _
    // Predicated region
    $region34: #{tpu_custom_call.1} parent=1 // pred_check
      _
    $region35: #{tpu_custom_call.1} parent=1 // pred_check_branch
      %352 = sbr.rel (0) target = $region37
    $region36: #{tpu_custom_call.1} parent=1 // pred_region
      %354 = dma.done [#allocation4], 48
    $region37: #{tpu_custom_call.1} parent=1 // pred_fallthru
      _
    %355 = vsyncpa [#allocation4], 1

</llo_original>
